<compile_context>
chip_gen: v6e
topology: v6e:2x2x1
jax: 0.10.0
libtpu: 0.0.40
codegen_flags: <defaults>
</compile_context>

<pallas_src>
import math

import jax
import jax.numpy as jnp
from jax.experimental import pallas as pl
from jax.experimental.pallas import tpu as pltpu

MAX_RES = 15.0
MIN_RES = 15.0 / 2000.0
DIV_FACTOR = 4
N_FREQ = int(math.log(MAX_RES / MIN_RES, DIV_FACTOR)) + 1  # = 6
EMB_DIM = 2 * N_FREQ                                       # = 12

# Deterministic compile-time frequency constants (from __init__):
#   2*pi * div_factor**k / max_res, k = 0..N_FREQ-1
_FREQS = tuple(2.0 * math.pi * (float(DIV_FACTOR) ** k) / MAX_RES
               for k in range(N_FREQ))


def _sinusoid_kernel(x_ref, o_ref):
    # x_ref: (1, tile_n)        -- lane-dense input (N on the 128-lane axis)
    # o_ref: (EMB_DIM, tile_n)  -- lane-dense output; sin rows 0..5, cos rows 6..11
    s = jnp.sqrt(x_ref[...] + 1e-8)                       # (1, tile_n)
    rows = [jnp.sin(f * s) for f in _FREQS] + [jnp.cos(f * s) for f in _FREQS]
    o_ref[...] = jnp.concatenate(rows, axis=0)            # one (12, tile_n) store


def _choose_tile_n(n: int, max_tile: int = 8192) -> int:
    """Pick a lane-axis tile: multiple of 128, large (<= max_tile), and giving
    at least 2 grid steps when N allows (megacore sharding on v7x)."""
    n128 = ((n + 127) // 128) * 128
    if n128 <= 128:
        return 128
    half = ((n128 // 2 + 127) // 128) * 128
    return max(128, min(max_tile, half))


def sinusoids_embedding(x: jnp.ndarray, tile_n: int | None = None) -> jnp.ndarray:
    """x: (N, 1) float -> (N, 12) float32, identical math to the PyTorch module."""
    assert x.ndim == 2 and x.shape[1] == 1
    n = x.shape[0]
    if tile_n is None:
        tile_n = _choose_tile_n(n)
    assert tile_n % 128 == 0

    n_pad = pl.cdiv(n, tile_n) * tile_n
    x_flat = x.reshape(n).astype(jnp.float32)
    if n_pad != n:
        x_flat = jnp.pad(x_flat, (0, n_pad - n))           # padded rows sliced off below
    x_rows = x_flat.reshape(1, n_pad)                       # lane-dense input

    out_t = pl.pallas_call(
        _sinusoid_kernel,
        out_shape=jax.ShapeDtypeStruct((EMB_DIM, n_pad), jnp.float32),
        grid_spec=pltpu.PrefetchScalarGridSpec(
            num_scalar_prefetch=0,
            grid=(n_pad // tile_n,),
            in_specs=[pl.BlockSpec((1, tile_n), lambda i: (0, i))],
            out_specs=pl.BlockSpec((EMB_DIM, tile_n), lambda i: (0, i)),
        ),
        compiler_params=pltpu.CompilerParams(
            dimension_semantics=("parallel",)),
    )(x_rows)

    # Layout plumbing back to the PyTorch (N, 12) convention.
    return out_t.T[:n]


def _reference(x: jnp.ndarray) -> jnp.ndarray:
    xs = jnp.sqrt(x.astype(jnp.float32) + 1e-8)
    freqs = jnp.array(_FREQS, dtype=jnp.float32)
    emb = xs * freqs[None, :]
    return jnp.concatenate([jnp.sin(emb), jnp.cos(emb)], axis=-1)


if __name__ == "__main__":
    key = jax.random.PRNGKey(0)
    N = 256  # e.g. number of edges in a small EGNN graph
    # squared distances are non-negative
    x = jax.random.uniform(key, (N, 1), dtype=jnp.float32, minval=0.0, maxval=4.0)

    out = sinusoids_embedding(x)
    out = jax.block_until_ready(out)

    ref = _reference(x)
    assert out.shape == (N, EMB_DIM)
    assert jnp.allclose(out, ref, atol=1e-5, rtol=1e-5)

    # Also exercise a non-multiple-of-128 edge count (padding path).
    x2 = jax.random.uniform(jax.random.PRNGKey(1), (300, 1), dtype=jnp.float32,
                            minval=0.0, maxval=4.0)
    out2 = jax.block_until_ready(sinusoids_embedding(x2))
    assert out2.shape == (300, EMB_DIM)
    assert jnp.allclose(out2, _reference(x2), atol=1e-5, rtol=1e-5)

    print("KERNEL_OK")
</pallas_src>

<mosaic_0001>
module attributes {stable_mosaic.version = 11 : i64} {
  func.func @_sinusoid_kernel(%arg0: i32, %arg1: memref<1x128xf32, #tpu.memory_space<vmem>>, %arg2: memref<12x128xf32, #tpu.memory_space<vmem>>) attributes {dimension_semantics = [#tpu.dimension_semantics<parallel>], iteration_bounds = array<i64: 2>, scalar_prefetch = 0 : i64, scratch_operands = 0 : i64, tpu.core_type = #tpu.core_type<tc>, window_params = [{transform_indices = @transform_0, window_bounds = array<i64: 1, 128>}, {transform_indices = @transform_1, window_bounds = array<i64: 12, 128>}]} {
    %c0 = arith.constant 0 : index
    %c0_0 = arith.constant 0 : index
    %0 = vector.load %arg1[%c0, %c0_0] : memref<1x128xf32, #tpu.memory_space<vmem>>, vector<1x128xf32>
    %cst = arith.constant 9.99999993E-9 : f32
    %1 = vector.broadcast %cst : f32 to vector<1x128xf32>
    %2 = arith.addf %0, %1 : vector<1x128xf32>
    %3 = math.sqrt %2 : vector<1x128xf32>
    %cst_1 = arith.constant 0.418879032 : f32
    %4 = vector.broadcast %cst_1 : f32 to vector<1x128xf32>
    %5 = arith.mulf %4, %3 : vector<1x128xf32>
    %6 = math.sin %5 : vector<1x128xf32>
    %cst_2 = arith.constant 1.67551613 : f32
    %7 = vector.broadcast %cst_2 : f32 to vector<1x128xf32>
    %8 = arith.mulf %7, %3 : vector<1x128xf32>
    %9 = math.sin %8 : vector<1x128xf32>
    %cst_3 = arith.constant 6.70206451 : f32
    %10 = vector.broadcast %cst_3 : f32 to vector<1x128xf32>
    %11 = arith.mulf %10, %3 : vector<1x128xf32>
    %12 = math.sin %11 : vector<1x128xf32>
    %cst_4 = arith.constant 26.8082581 : f32
    %13 = vector.broadcast %cst_4 : f32 to vector<1x128xf32>
    %14 = arith.mulf %13, %3 : vector<1x128xf32>
    %15 = math.sin %14 : vector<1x128xf32>
    %cst_5 = arith.constant 107.233032 : f32
    %16 = vector.broadcast %cst_5 : f32 to vector<1x128xf32>
    %17 = arith.mulf %16, %3 : vector<1x128xf32>
    %18 = math.sin %17 : vector<1x128xf32>
    %cst_6 = arith.constant 428.932129 : f32
    %19 = vector.broadcast %cst_6 : f32 to vector<1x128xf32>
    %20 = arith.mulf %19, %3 : vector<1x128xf32>
    %21 = math.sin %20 : vector<1x128xf32>
    %cst_7 = arith.constant 0.418879032 : f32
    %22 = vector.broadcast %cst_7 : f32 to vector<1x128xf32>
    %23 = arith.mulf %22, %3 : vector<1x128xf32>
    %24 = math.cos %23 : vector<1x128xf32>
    %cst_8 = arith.constant 1.67551613 : f32
    %25 = vector.broadcast %cst_8 : f32 to vector<1x128xf32>
    %26 = arith.mulf %25, %3 : vector<1x128xf32>
    %27 = math.cos %26 : vector<1x128xf32>
    %cst_9 = arith.constant 6.70206451 : f32
    %28 = vector.broadcast %cst_9 : f32 to vector<1x128xf32>
    %29 = arith.mulf %28, %3 : vector<1x128xf32>
    %30 = math.cos %29 : vector<1x128xf32>
    %cst_10 = arith.constant 26.8082581 : f32
    %31 = vector.broadcast %cst_10 : f32 to vector<1x128xf32>
    %32 = arith.mulf %31, %3 : vector<1x128xf32>
    %33 = math.cos %32 : vector<1x128xf32>
    %cst_11 = arith.constant 107.233032 : f32
    %34 = vector.broadcast %cst_11 : f32 to vector<1x128xf32>
    %35 = arith.mulf %34, %3 : vector<1x128xf32>
    %36 = math.cos %35 : vector<1x128xf32>
    %cst_12 = arith.constant 428.932129 : f32
    %37 = vector.broadcast %cst_12 : f32 to vector<1x128xf32>
    %38 = arith.mulf %37, %3 : vector<1x128xf32>
    %39 = math.cos %38 : vector<1x128xf32>
    %40 = tpu.concatenate %6, %9, %12, %15, %18, %21, %24, %27, %30, %33, %36, %39 in 0 : vector<1x128xf32>, vector<1x128xf32>, vector<1x128xf32>, vector<1x128xf32>, vector<1x128xf32>, vector<1x128xf32>, vector<1x128xf32>, vector<1x128xf32>, vector<1x128xf32>, vector<1x128xf32>, vector<1x128xf32>, vector<1x128xf32> -> vector<12x128xf32>
    %c0_13 = arith.constant 0 : index
    %c0_14 = arith.constant 0 : index
    %41 = vector.load %arg2[%c0_13, %c0_14] : memref<12x128xf32, #tpu.memory_space<vmem>>, vector<12x128xf32>
    tpu.vector_store %arg2[%c0_13, %c0_14], %40 {strides = array<i32>} : memref<12x128xf32, #tpu.memory_space<vmem>>, vector<12x128xf32>,
    return
  }
  func.func @transform_0(%arg0: i32) -> (i32, i32) {
    %c0_i32 = arith.constant 0 : i32
    %c0_i32_0 = arith.constant 0 : i32
    return %c0_i32, %arg0 : i32, i32
  }
  func.func @transform_1(%arg0: i32) -> (i32, i32) {
    %c0_i32 = arith.constant 0 : i32
    %c0_i32_0 = arith.constant 0 : i32
    return %c0_i32, %arg0 : i32, i32
  }
}

</mosaic_0001>

<llo_original>
// kernel: tpu_custom_call.1
$region0: #{tpu_custom_call.1}
  #allocation0 [shape = 'u32[]', space=smem, size = 0x4, offset = 0x4, fixed_abs, tag = 'smem constant byte address 0x4 - core index']
  #allocation1 [shape = 'u32[144,128]{1,0:T(1,128)}', space=vmem, size = 0x12000, scoped, tag = 'internal scratch']
  %s0 = inlined_call_operand.hbm [shape: f32[1,256], index: 0, kind: input, shape index: {}]
  %s1 = inlined_call_operand.hbm [shape: f32[12,256], index: 1, kind: output, shape index: {}]
  %s2 = sld [smem:[#allocation0]]
  $region41: #{tpu_custom_call.1} parent=0
    _
  %s4 = ssub.s32 1, %s2
  %s5 = scalar_select 0, %s4, %s2
  $region1: #{tpu_custom_call.1} parent=0
    #allocation2 [shape = 'u8[1024]{0}', space=vmem, size = 0x400, scoped, tag = 'input window, operand 0']
    #allocation3 [shape = 's32[2]{0}', space=sflag, size = 0x8, scoped, tag = 'scoped memory for tpu_custom_call.1']
    #allocation4 [shape = 's32[2]{0}', space=sflag, size = 0x8, scoped, tag = 'scoped memory for tpu_custom_call.1']
    #allocation5 [shape = 'u8[16384]{0}', space=vmem, size = 0x4000, scoped, tag = 'output window, operand 0']
    %6 = vsyncpa [#allocation3], 0
    %s7 = scalar_lea.sflag [#allocation3], 1
    %8 = vsyncpa %s7, 0
    %9 = vsyncpa [#allocation4], 0
    %s10 = scalar_lea.sflag [#allocation4], 1
    %11 = vsyncpa %s10, 0
    loop: start=0, step=1, limit=4
    $region2: #{tpu_custom_call.1} parent=1 // loop_pre_header
      _
    $region3: #{tpu_custom_call.1} parent=1 // loop_header
      %s13 = sphi 0, %s17
      %p14 = scmp.ge.s32.totalorder %s13, 4
      %s23 = sphi 0, %s25
      %s26 = sphi 0, %s23
      %s27 = sphi 0, %s26
      %s43 = sphi 0, %s27
      %s49 = sphi 0, %s51
      %s52 = sphi 0, %s49
      %s53 = sphi 0, %s52
      %s69 = sphi 0, %s53
    $region4: #{tpu_custom_call.1} parent=1 // loop_header_branch
      %16 = sbr.rel (%p14) target = $region8
    $region5: #{tpu_custom_call.1} parent=1 // loop_body
      %s18 = ssub.s32 %s13, 1
      %s19 = ssub.s32 %s13, 2
      %s20 = sadd.s32 %s13, 1
      %s21 = ssub.s32 %s13, %s20
      %p22 = scmp.eq.s32.totalorder %s21, 0
      %s24 = sadd.s32 %s23, 1
      %s25 = scalar_select %p22, %s23, %s24
      %p28 = pneg %p22
      %p29 = scmp.eq.s32.totalorder %s13, 1
      %p30 = por %p28, %p29
      %p31 = scmp.ne.s32.totalorder %s23, %s26
      %p32 = scmp.eq.s32.totalorder %s13, 0
      %p33 = por %p31, %p32
      %p34 = scmp.ne.s32.totalorder %s23, %s26
      %p35 = scmp.eq.s32.totalorder %s18, 1
      %p36 = por %p34, %p35
      %p37 = scmp.ne.s32.totalorder %s26, %s27
      %p38 = scmp.eq.s32.totalorder %s18, 0
      %p39 = por %p37, %p38
      %p40 = scmp.ne.s32.totalorder %s26, %s27
      %p41 = scmp.eq.s32.totalorder %s19, 1
      %p42 = por %p40, %p41
      %p44 = scmp.ne.s32.totalorder %s27, %s43
      %p45 = scmp.eq.s32.totalorder %s19, 0
      %p46 = por %p44, %p45
      %s47 = ssub.s32 %s13, %s20
      %p48 = scmp.eq.s32.totalorder %s47, 0
      %s50 = sadd.s32 %s49, 1
      %s51 = scalar_select %p48, %s49, %s50
      %p54 = pneg %p48
      %p55 = scmp.eq.s32.totalorder %s13, 1
      %p56 = por %p54, %p55
      %p57 = scmp.ne.s32.totalorder %s49, %s52
      %p58 = scmp.eq.s32.totalorder %s13, 0
      %p59 = por %p57, %p58
      %p60 = scmp.ne.s32.totalorder %s49, %s52
      %p61 = scmp.eq.s32.totalorder %s18, 1
      %p62 = por %p60, %p61
      %p63 = scmp.ne.s32.totalorder %s52, %s53
      %p64 = scmp.eq.s32.totalorder %s18, 0
      %p65 = por %p63, %p64
      %p66 = scmp.ne.s32.totalorder %s52, %s53
      %p67 = scmp.eq.s32.totalorder %s19, 1
      %p68 = por %p66, %p67
      %p70 = scmp.ne.s32.totalorder %s53, %s69
      %p71 = scmp.eq.s32.totalorder %s19, 0
      %p72 = por %p70, %p71
      %p73 = scmp.le.s32.totalorder 1, %s13
      %p74 = scmp.lt.s32.totalorder %s13, 3
      %p75 = pnand %p73, %p74
      %p76 = pneg %p75
      // Predicated region
      $region9: #{tpu_custom_call.1} parent=5 // pred_check
        _
      $region10: #{tpu_custom_call.1} parent=5 // pred_check_branch
        %78 = sbr.rel (%p75) target = $region12
      $region11: #{tpu_custom_call.1} parent=5 // pred_region
        %s79 = ssub.s32 %s13, 1
      $region12: #{tpu_custom_call.1} parent=5 // pred_fallthru
        _
      %p80 = scmp.lt.s32.totalorder %s13, 2
      // Predicated region
      $region13: #{tpu_custom_call.1} parent=5 // pred_check
        %p81 = pneg %p80
      $region14: #{tpu_custom_call.1} parent=5 // pred_check_branch
        %83 = sbr.rel (%p81) target = $region16
      $region15: #{tpu_custom_call.1} parent=5 // pred_region
        // Predicated region
        $region17: #{tpu_custom_call.1} parent=15 // pred_check
          %p84 = pneg %p33
        $region18: #{tpu_custom_call.1} parent=15 // pred_check_branch
          %86 = sbr.rel (%p84) target = $region20
        $region19: #{tpu_custom_call.1} parent=15 // pred_region
          %s87 = sand.u32 %s23, 1
          %s88 = scalar_lea.sflag [#allocation3], %s87
          %s89 = sand.u32 %s23, 1
          %s90 = scalar_lea.vmem [#allocation2], %s89
          %s92 = ssub.s32 16, 16
          %93 = vsyncadd %s88, %s92
          %s94 = smul.addr %s13, 16
          %s95 = scalar_lea.hbm %s0, %s94
          %s97 = sshll.u32 %s90, 4
          %s98 = int_to_ptr.vmem [resolvable:$true] %s97
          %100 = dma.hbm_to_vmem [thread:$0]  %s95, 16, %s98, %s88
        $region20: #{tpu_custom_call.1} parent=15 // pred_fallthru
          _
      $region16: #{tpu_custom_call.1} parent=5 // pred_fallthru
        _
      %p101 = scmp.le.s32.totalorder 1, %s13
      %p102 = scmp.lt.s32.totalorder %s13, 3
      %p103 = pnand %p101, %p102
      %p104 = pneg %p103
      // Predicated region
      $region21: #{tpu_custom_call.1} parent=5 // pred_check
        _
      $region22: #{tpu_custom_call.1} parent=5 // pred_check_branch
        %106 = sbr.rel (%p103) target = $region24
      $region23: #{tpu_custom_call.1} parent=5 // pred_region
        %s107 = ssub.s32 %s13, 1
        %s108 = sand.u32 %s26, 1
        %s109 = scalar_lea.sflag [#allocation3], %s108
        %s110 = sand.u32 %s26, 1
        %s111 = scalar_lea.vmem [#allocation2], %s110
        // Predicated region
        $region25: #{tpu_custom_call.1} parent=23 // pred_check
          %p112 = pneg %p39
        $region26: #{tpu_custom_call.1} parent=23 // pred_check_branch
          %114 = sbr.rel (%p112) target = $region28
        $region27: #{tpu_custom_call.1} parent=23 // pred_region
          %115 = dma.done %s109, 16
        $region28: #{tpu_custom_call.1} parent=23 // pred_fallthru
          _
        %s116 = sand.u32 %s26, 1
        %s117 = scalar_lea.sflag [#allocation3], %s116
        %s118 = sand.u32 %s26, 1
        %s119 = scalar_lea.vmem [#allocation2], %s118
        %p120 = pneg %p39
        %p121 = pneg %p36
        %p122 = pneg %p65
        %p123 = pneg %p62
        %s124 = sand.u32 %s52, 1
        %s125 = scalar_lea.sflag [#allocation4], %s124
        %s126 = sand.u32 %s52, 1
        %s127 = smul.addr %s126, 16
        %s128 = scalar_lea.vmem [#allocation5], %s127
        %v129 = vld [vmem:[%s111] sm:$0x1]
        %v130 = vadd.f32 %v129, 1e-08
        %v131 = vrsqrt.pop %v130
        %v132 = vmul.f32 %v130, %v131
        %vm133 = vcmp.eq.f32.partialorder %v130, inf
        %v134 = vsel %vm133, %v130, %v132
        %vm135 = vcmp.eq.f32.partialorder %v130, 0.0
        %v136 = vand.u32 %v130, 2147483648
        %v137 = vsel %vm135, %v136, %v134
        %v138 = vmul.f32 %v137, 0.41887903
        %v139 = vand.u32 2147483647, %v138
        %vm140 = vcmp.le.f32.partialorder %v139, 0.7853982
        %vm141 = vcmp.lt.s32.totalorder %v138, 0
        %v142 = vand.u32 %v138, 2139095040
        %v143 = vshrl.u32 %v142, 23
        %v144 = vsub.s32 %v143, 127
        %v145 = vand.u32 2147483647, %v138
        %v146 = vand.u32 %v145, 8388607
        %v147 = vor.u32 %v146, 8388608
        %v148 = vsub.s32 0, %v147
        %v149 = vadd.s32 %v144, 1
        %vm150 = vcmp.gt.s32.totalorder %v149, 0
        %v151 = vsel %vm150, %v149, 0
        %v152 = vshrl.u32 %v151, 5
        %v153 = vand.u32 %v151, 31
        %v154 = vsub.s32 32, %v153
        %v155 = vshrl.u32 683565275, %v154
        %v156 = vshll.u32 683565275, %v153
        %v157 = vshrl.u32 2475754826, %v154
        %v158 = vor.u32 %v156, %v157
        %v159 = vshll.u32 2475754826, %v153
        %v160 = vshrl.u32 2131351028, %v154
        %v161 = vor.u32 %v159, %v160
        %v162 = vshll.u32 2131351028, %v153
        %v163 = vshrl.u32 2102212464, %v154
        %v164 = vor.u32 %v162, %v163
        %v165 = vshll.u32 2102212464, %v153
        %v166 = vshrl.u32 920167782, %v154
        %v167 = vor.u32 %v165, %v166
        %v168 = vshll.u32 920167782, %v153
        %v169 = vshrl.u32 1326507024, %v154
        %v170 = vor.u32 %v168, %v169
        %vm171 = vcmp.lt.s32.totalorder %v152, 1
        %vm172 = vcmp.lt.s32.totalorder %v152, 2
        %vm173 = vcmp.lt.s32.totalorder %v152, 3
        %vm174 = vcmp.lt.s32.totalorder %v152, 4
        %v175 = vsel %vm171, %v155, %v158
        %v176 = vsel %vm174, %v164, 2102212464
        %v177 = vsel %vm173, %v161, %v176
        %v178 = vsel %vm172, %v175, %v177
        %v179 = vsel %vm171, %v158, %v161
        %v180 = vsel %vm174, %v167, 920167782
        %v181 = vsel %vm173, %v164, %v180
        %v182 = vsel %vm172, %v179, %v181
        %v183 = vsel %vm171, %v161, %v164
        %v184 = vsel %vm174, %v170, 1326507024
        %v185 = vsel %vm173, %v167, %v184
        %v186 = vsel %vm172, %v183, %v185
        %v187 = vshll.u32 %v147, 8
        %v188 = vmul.u32.u64.compose %v187, %v186
        %v189 = vextract.low.u32 %v188
        %v190 = vextract.high.u32 %v188
        %v191 = vmul.u32.u64.compose %v187, %v182
        %v192 = vextract.low.u32 %v191
        %v193 = vextract.high.u32 %v191
        %v194 = vmul.u32 %v187, %v178
        %v195 = vadd.s32 %v190, %v192
        %vm196 = vc.u32 %v190, %v192
        %v197 = vadd.s32 %v193, 1
        %v198 = vsel %vm196, %v197, %v193
        %v199 = vadd.s32 %v194, %v198
        %v200 = vadd.s32 %v199, 536870912
        %v201 = vshrl.u32 %v200, 30
        %v202 = vshll.u32 %v201, 30
        %v203 = vsub.s32 %v199, %v202
        %vm204 = vcmp.lt.s32.totalorder %v203, 0
        %v205 = vsub.s32 0, %v203
        %v206 = vsel %vm204, %v205, %v203
        %v207 = vclz %v206
        %v208 = vsub.s32 %v207, 2
        %vm209 = vcmp.gt.s32.totalorder 0, %v208
        %v210 = vsel %vm209, 0, %v208
        %v211 = vsub.s32 32, %v210
        %v212 = vshll.u32 %v203, %v210
        %v213 = vshrl.u32 %v195, %v211
        %v214 = vor.u32 %v212, %v213
        %v215 = vsub.s32 4294967266, %v210
        %v216 = vadd.s32 %v215, 127
        %v217 = vshll.u32 %v216, 23
        %v218 = vor.u32 4788187, %v217
        %v219 = vand.u32 2147483647, %v218
        %v221 = vcvt.s32.f32 %v214
        %v222 = vmul.f32 %v221, %v219
        %v223 = vxor.u32 %v222, 2147483648
        %v224 = vsel %vm141, %v223, %v222
        %v225 = vsub.s32 4, %v201
        %v226 = vsel %vm141, %v225, %v201
        %v227 = vsel %vm140, %v138, %v224
        %v228 = vsel %vm140, 0, %v226
        %v229 = vcosq.f32.pop %v227
        %v230 = vsinq.f32.pop %v227
        %vm231 = vweird.f32 %v138
        %v232 = vadd.s32 %v228, 3
        %v233 = vand.u32 %v232, 3
        %vm234 = vcmp.lt.s32.totalorder %v233, 2
        %vm235 = vcmp.eq.s32.totalorder %v233, 0
        %v236 = vxor.u32 %v230, 2147483648
        %v237 = vsel %vm235, %v229, %v236
        %vm238 = vcmp.eq.s32.totalorder %v233, 2
        %v239 = vxor.u32 %v229, 2147483648
        %v240 = vsel %vm238, %v239, %v230
        %v241 = vsel %vm234, %v237, %v240
        %v242 = vsel %vm231, nan, %v241
        %v243 = vmul.f32 %v137, 1.6755161
        %v244 = vand.u32 2147483647, %v243
        %vm245 = vcmp.le.f32.partialorder %v244, 0.7853982
        %vm246 = vcmp.lt.s32.totalorder %v243, 0
        %v247 = vand.u32 %v243, 2139095040
        %v248 = vshrl.u32 %v247, 23
        %v249 = vsub.s32 %v248, 127
        %v250 = vand.u32 2147483647, %v243
        %v251 = vand.u32 %v250, 8388607
        %v252 = vor.u32 %v251, 8388608
        %v253 = vsub.s32 0, %v252
        %v254 = vadd.s32 %v249, 1
        %vm255 = vcmp.gt.s32.totalorder %v254, 0
        %v256 = vsel %vm255, %v254, 0
        %v257 = vshrl.u32 %v256, 5
        %v258 = vand.u32 %v256, 31
        %v259 = vsub.s32 32, %v258
        %v260 = vshrl.u32 683565275, %v259
        %v261 = vshll.u32 683565275, %v258
        %v262 = vshrl.u32 2475754826, %v259
        %v263 = vor.u32 %v261, %v262
        %v264 = vshll.u32 2475754826, %v258
        %v265 = vshrl.u32 2131351028, %v259
        %v266 = vor.u32 %v264, %v265
        %v267 = vshll.u32 2131351028, %v258
        %v268 = vshrl.u32 2102212464, %v259
        %v269 = vor.u32 %v267, %v268
        %v270 = vshll.u32 2102212464, %v258
        %v271 = vshrl.u32 920167782, %v259
        %v272 = vor.u32 %v270, %v271
        %v273 = vshll.u32 920167782, %v258
        %v274 = vshrl.u32 1326507024, %v259
        %v275 = vor.u32 %v273, %v274
        %vm276 = vcmp.lt.s32.totalorder %v257, 1
        %vm277 = vcmp.lt.s32.totalorder %v257, 2
        %vm278 = vcmp.lt.s32.totalorder %v257, 3
        %vm279 = vcmp.lt.s32.totalorder %v257, 4
        %v280 = vsel %vm276, %v260, %v263
        %v281 = vsel %vm279, %v269, 2102212464
        %v282 = vsel %vm278, %v266, %v281
        %v283 = vsel %vm277, %v280, %v282
        %v284 = vsel %vm276, %v263, %v266
        %v285 = vsel %vm279, %v272, 920167782
        %v286 = vsel %vm278, %v269, %v285
        %v287 = vsel %vm277, %v284, %v286
        %v288 = vsel %vm276, %v266, %v269
        %v289 = vsel %vm279, %v275, 1326507024
        %v290 = vsel %vm278, %v272, %v289
        %v291 = vsel %vm277, %v288, %v290
        %v292 = vshll.u32 %v252, 8
        %v293 = vmul.u32.u64.compose %v292, %v291
        %v294 = vextract.low.u32 %v293
        %v295 = vextract.high.u32 %v293
        %v296 = vmul.u32.u64.compose %v292, %v287
        %v297 = vextract.low.u32 %v296
        %v298 = vextract.high.u32 %v296
        %v299 = vmul.u32 %v292, %v283
        %v300 = vadd.s32 %v295, %v297
        %vm301 = vc.u32 %v295, %v297
        %v302 = vadd.s32 %v298, 1
        %v303 = vsel %vm301, %v302, %v298
        %v304 = vadd.s32 %v299, %v303
        %v305 = vadd.s32 %v304, 536870912
        %v306 = vshrl.u32 %v305, 30
        %v307 = vshll.u32 %v306, 30
        %v308 = vsub.s32 %v304, %v307
        %vm309 = vcmp.lt.s32.totalorder %v308, 0
        %v310 = vsub.s32 0, %v308
        %v311 = vsel %vm309, %v310, %v308
        %v312 = vclz %v311
        %v313 = vsub.s32 %v312, 2
        %vm314 = vcmp.gt.s32.totalorder 0, %v313
        %v315 = vsel %vm314, 0, %v313
        %v316 = vsub.s32 32, %v315
        %v317 = vshll.u32 %v308, %v315
        %v318 = vshrl.u32 %v300, %v316
        %v319 = vor.u32 %v317, %v318
        %v320 = vsub.s32 4294967266, %v315
        %v321 = vadd.s32 %v320, 127
        %v322 = vshll.u32 %v321, 23
        %v323 = vor.u32 4788187, %v322
        %v324 = vand.u32 2147483647, %v323
        %v326 = vcvt.s32.f32 %v319
        %v327 = vmul.f32 %v326, %v324
        %v328 = vxor.u32 %v327, 2147483648
        %v329 = vsel %vm246, %v328, %v327
        %v330 = vsub.s32 4, %v306
        %v331 = vsel %vm246, %v330, %v306
        %v332 = vsel %vm245, %v243, %v329
        %v333 = vsel %vm245, 0, %v331
        %v334 = vcosq.f32.pop %v332
        %v335 = vsinq.f32.pop %v332
        %vm336 = vweird.f32 %v243
        %v337 = vadd.s32 %v333, 3
        %v338 = vand.u32 %v337, 3
        %vm339 = vcmp.lt.s32.totalorder %v338, 2
        %vm340 = vcmp.eq.s32.totalorder %v338, 0
        %v341 = vxor.u32 %v335, 2147483648
        %v342 = vsel %vm340, %v334, %v341
        %vm343 = vcmp.eq.s32.totalorder %v338, 2
        %v344 = vxor.u32 %v334, 2147483648
        %v345 = vsel %vm343, %v344, %v335
        %v346 = vsel %vm339, %v342, %v345
        %v347 = vsel %vm336, nan, %v346
        %v348 = vmul.f32 %v137, 6.7020645
        %v349 = vand.u32 2147483647, %v348
        %vm350 = vcmp.le.f32.partialorder %v349, 0.7853982
        %vm351 = vcmp.lt.s32.totalorder %v348, 0
        %v352 = vand.u32 %v348, 2139095040
        %v353 = vshrl.u32 %v352, 23
        %v354 = vsub.s32 %v353, 127
        %v355 = vand.u32 2147483647, %v348
        %v356 = vand.u32 %v355, 8388607
        %v357 = vor.u32 %v356, 8388608
        %v358 = vsub.s32 0, %v357
        %v359 = vadd.s32 %v354, 1
        %vm360 = vcmp.gt.s32.totalorder %v359, 0
        %v361 = vsel %vm360, %v359, 0
        %v362 = vshrl.u32 %v361, 5
        %v363 = vand.u32 %v361, 31
        %v364 = vsub.s32 32, %v363
        %v365 = vshrl.u32 683565275, %v364
        %v366 = vshll.u32 683565275, %v363
        %v367 = vshrl.u32 2475754826, %v364
        %v368 = vor.u32 %v366, %v367
        %v369 = vshll.u32 2475754826, %v363
        %v370 = vshrl.u32 2131351028, %v364
        %v371 = vor.u32 %v369, %v370
        %v372 = vshll.u32 2131351028, %v363
        %v373 = vshrl.u32 2102212464, %v364
        %v374 = vor.u32 %v372, %v373
        %v375 = vshll.u32 2102212464, %v363
        %v376 = vshrl.u32 920167782, %v364
        %v377 = vor.u32 %v375, %v376
        %v378 = vshll.u32 920167782, %v363
        %v379 = vshrl.u32 1326507024, %v364
        %v380 = vor.u32 %v378, %v379
        %vm381 = vcmp.lt.s32.totalorder %v362, 1
        %vm382 = vcmp.lt.s32.totalorder %v362, 2
        %vm383 = vcmp.lt.s32.totalorder %v362, 3
        %vm384 = vcmp.lt.s32.totalorder %v362, 4
        %v385 = vsel %vm381, %v365, %v368
        %v386 = vsel %vm384, %v374, 2102212464
        %v387 = vsel %vm383, %v371, %v386
        %v388 = vsel %vm382, %v385, %v387
        %v389 = vsel %vm381, %v368, %v371
        %v390 = vsel %vm384, %v377, 920167782
        %v391 = vsel %vm383, %v374, %v390
        %v392 = vsel %vm382, %v389, %v391
        %v393 = vsel %vm381, %v371, %v374
        %v394 = vsel %vm384, %v380, 1326507024
        %v395 = vsel %vm383, %v377, %v394
        %v396 = vsel %vm382, %v393, %v395
        %v397 = vshll.u32 %v357, 8
        %v398 = vmul.u32.u64.compose %v397, %v396
        %v399 = vextract.low.u32 %v398
        %v400 = vextract.high.u32 %v398
        %v401 = vmul.u32.u64.compose %v397, %v392
        %v402 = vextract.low.u32 %v401
        %v403 = vextract.high.u32 %v401
        %v404 = vmul.u32 %v397, %v388
        %v405 = vadd.s32 %v400, %v402
        %vm406 = vc.u32 %v400, %v402
        %v407 = vadd.s32 %v403, 1
        %v408 = vsel %vm406, %v407, %v403
        %v409 = vadd.s32 %v404, %v408
        %v410 = vadd.s32 %v409, 536870912
        %v411 = vshrl.u32 %v410, 30
        %v412 = vshll.u32 %v411, 30
        %v413 = vsub.s32 %v409, %v412
        %vm414 = vcmp.lt.s32.totalorder %v413, 0
        %v415 = vsub.s32 0, %v413
        %v416 = vsel %vm414, %v415, %v413
        %v417 = vclz %v416
        %v418 = vsub.s32 %v417, 2
        %vm419 = vcmp.gt.s32.totalorder 0, %v418
        %v420 = vsel %vm419, 0, %v418
        %v421 = vsub.s32 32, %v420
        %v422 = vshll.u32 %v413, %v420
        %v423 = vshrl.u32 %v405, %v421
        %v424 = vor.u32 %v422, %v423
        %v425 = vsub.s32 4294967266, %v420
        %v426 = vadd.s32 %v425, 127
        %v427 = vshll.u32 %v426, 23
        %v428 = vor.u32 4788187, %v427
        %v429 = vand.u32 2147483647, %v428
        %v431 = vcvt.s32.f32 %v424
        %v432 = vmul.f32 %v431, %v429
        %v433 = vxor.u32 %v432, 2147483648
        %v434 = vsel %vm351, %v433, %v432
        %v435 = vsub.s32 4, %v411
        %v436 = vsel %vm351, %v435, %v411
        %v437 = vsel %vm350, %v348, %v434
        %v438 = vsel %vm350, 0, %v436
        %v439 = vcosq.f32.pop %v437
        %v440 = vsinq.f32.pop %v437
        %vm441 = vweird.f32 %v348
        %v442 = vadd.s32 %v438, 3
        %v443 = vand.u32 %v442, 3
        %vm444 = vcmp.lt.s32.totalorder %v443, 2
        %vm445 = vcmp.eq.s32.totalorder %v443, 0
        %v446 = vxor.u32 %v440, 2147483648
        %v447 = vsel %vm445, %v439, %v446
        %vm448 = vcmp.eq.s32.totalorder %v443, 2
        %v449 = vxor.u32 %v439, 2147483648
        %v450 = vsel %vm448, %v449, %v440
        %v451 = vsel %vm444, %v447, %v450
        %v452 = vsel %vm441, nan, %v451
        %v453 = vmul.f32 %v137, 26.808258
        %v454 = vand.u32 2147483647, %v453
        %vm455 = vcmp.le.f32.partialorder %v454, 0.7853982
        %vm456 = vcmp.lt.s32.totalorder %v453, 0
        %v457 = vand.u32 %v453, 2139095040
        %v458 = vshrl.u32 %v457, 23
        %v459 = vsub.s32 %v458, 127
        %v460 = vand.u32 2147483647, %v453
        %v461 = vand.u32 %v460, 8388607
        %v462 = vor.u32 %v461, 8388608
        %v463 = vsub.s32 0, %v462
        %v464 = vadd.s32 %v459, 1
        %vm465 = vcmp.gt.s32.totalorder %v464, 0
        %v466 = vsel %vm465, %v464, 0
        %v467 = vshrl.u32 %v466, 5
        %v468 = vand.u32 %v466, 31
        %v469 = vsub.s32 32, %v468
        %v470 = vshrl.u32 683565275, %v469
        %v471 = vshll.u32 683565275, %v468
        %v472 = vshrl.u32 2475754826, %v469
        %v473 = vor.u32 %v471, %v472
        %v474 = vshll.u32 2475754826, %v468
        %v475 = vshrl.u32 2131351028, %v469
        %v476 = vor.u32 %v474, %v475
        %v477 = vshll.u32 2131351028, %v468
        %v478 = vshrl.u32 2102212464, %v469
        %v479 = vor.u32 %v477, %v478
        %v480 = vshll.u32 2102212464, %v468
        %v481 = vshrl.u32 920167782, %v469
        %v482 = vor.u32 %v480, %v481
        %v483 = vshll.u32 920167782, %v468
        %v484 = vshrl.u32 1326507024, %v469
        %v485 = vor.u32 %v483, %v484
        %vm486 = vcmp.lt.s32.totalorder %v467, 1
        %vm487 = vcmp.lt.s32.totalorder %v467, 2
        %vm488 = vcmp.lt.s32.totalorder %v467, 3
        %vm489 = vcmp.lt.s32.totalorder %v467, 4
        %v490 = vsel %vm486, %v470, %v473
        %v491 = vsel %vm489, %v479, 2102212464
        %v492 = vsel %vm488, %v476, %v491
        %v493 = vsel %vm487, %v490, %v492
        %v494 = vsel %vm486, %v473, %v476
        %v495 = vsel %vm489, %v482, 920167782
        %v496 = vsel %vm488, %v479, %v495
        %v497 = vsel %vm487, %v494, %v496
        %v498 = vsel %vm486, %v476, %v479
        %v499 = vsel %vm489, %v485, 1326507024
        %v500 = vsel %vm488, %v482, %v499
        %v501 = vsel %vm487, %v498, %v500
        %v502 = vshll.u32 %v462, 8
        %v503 = vmul.u32.u64.compose %v502, %v501
        %v504 = vextract.low.u32 %v503
        %v505 = vextract.high.u32 %v503
        %v506 = vmul.u32.u64.compose %v502, %v497
        %v507 = vextract.low.u32 %v506
        %v508 = vextract.high.u32 %v506
        %v509 = vmul.u32 %v502, %v493
        %v510 = vadd.s32 %v505, %v507
        %vm511 = vc.u32 %v505, %v507
        %v512 = vadd.s32 %v508, 1
        %v513 = vsel %vm511, %v512, %v508
        %v514 = vadd.s32 %v509, %v513
        %v515 = vadd.s32 %v514, 536870912
        %v516 = vshrl.u32 %v515, 30
        %v517 = vshll.u32 %v516, 30
        %v518 = vsub.s32 %v514, %v517
        %vm519 = vcmp.lt.s32.totalorder %v518, 0
        %v520 = vsub.s32 0, %v518
        %v521 = vsel %vm519, %v520, %v518
        %v522 = vclz %v521
        %v523 = vsub.s32 %v522, 2
        %vm524 = vcmp.gt.s32.totalorder 0, %v523
        %v525 = vsel %vm524, 0, %v523
        %v526 = vsub.s32 32, %v525
        %v527 = vshll.u32 %v518, %v525
        %v528 = vshrl.u32 %v510, %v526
        %v529 = vor.u32 %v527, %v528
        %v530 = vsub.s32 4294967266, %v525
        %v531 = vadd.s32 %v530, 127
        %v532 = vshll.u32 %v531, 23
        %v533 = vor.u32 4788187, %v532
        %v534 = vand.u32 2147483647, %v533
        %v536 = vcvt.s32.f32 %v529
        %v537 = vmul.f32 %v536, %v534
        %v538 = vxor.u32 %v537, 2147483648
        %v539 = vsel %vm456, %v538, %v537
        %v540 = vsub.s32 4, %v516
        %v541 = vsel %vm456, %v540, %v516
        %v542 = vsel %vm455, %v453, %v539
        %v543 = vsel %vm455, 0, %v541
        %v544 = vcosq.f32.pop %v542
        %v545 = vsinq.f32.pop %v542
        %vm546 = vweird.f32 %v453
        %v547 = vadd.s32 %v543, 3
        %v548 = vand.u32 %v547, 3
        %vm549 = vcmp.lt.s32.totalorder %v548, 2
        %vm550 = vcmp.eq.s32.totalorder %v548, 0
        %v551 = vxor.u32 %v545, 2147483648
        %v552 = vsel %vm550, %v544, %v551
        %vm553 = vcmp.eq.s32.totalorder %v548, 2
        %v554 = vxor.u32 %v544, 2147483648
        %v555 = vsel %vm553, %v554, %v545
        %v556 = vsel %vm549, %v552, %v555
        %v557 = vsel %vm546, nan, %v556
        %v558 = vmul.f32 %v137, 107.23303
        %v559 = vand.u32 2147483647, %v558
        %vm560 = vcmp.le.f32.partialorder %v559, 0.7853982
        %vm561 = vcmp.lt.s32.totalorder %v558, 0
        %v562 = vand.u32 %v558, 2139095040
        %v563 = vshrl.u32 %v562, 23
        %v564 = vsub.s32 %v563, 127
        %v565 = vand.u32 2147483647, %v558
        %v566 = vand.u32 %v565, 8388607
        %v567 = vor.u32 %v566, 8388608
        %v568 = vsub.s32 0, %v567
        %v569 = vadd.s32 %v564, 1
        %vm570 = vcmp.gt.s32.totalorder %v569, 0
        %v571 = vsel %vm570, %v569, 0
        %v572 = vshrl.u32 %v571, 5
        %v573 = vand.u32 %v571, 31
        %v574 = vsub.s32 32, %v573
        %v575 = vshrl.u32 683565275, %v574
        %v576 = vshll.u32 683565275, %v573
        %v577 = vshrl.u32 2475754826, %v574
        %v578 = vor.u32 %v576, %v577
        %v579 = vshll.u32 2475754826, %v573
        %v580 = vshrl.u32 2131351028, %v574
        %v581 = vor.u32 %v579, %v580
        %v582 = vshll.u32 2131351028, %v573
        %v583 = vshrl.u32 2102212464, %v574
        %v584 = vor.u32 %v582, %v583
        %v585 = vshll.u32 2102212464, %v573
        %v586 = vshrl.u32 920167782, %v574
        %v587 = vor.u32 %v585, %v586
        %v588 = vshll.u32 920167782, %v573
        %v589 = vshrl.u32 1326507024, %v574
        %v590 = vor.u32 %v588, %v589
        %vm591 = vcmp.lt.s32.totalorder %v572, 1
        %vm592 = vcmp.lt.s32.totalorder %v572, 2
        %vm593 = vcmp.lt.s32.totalorder %v572, 3
        %vm594 = vcmp.lt.s32.totalorder %v572, 4
        %v595 = vsel %vm591, %v575, %v578
        %v596 = vsel %vm594, %v584, 2102212464
        %v597 = vsel %vm593, %v581, %v596
        %v598 = vsel %vm592, %v595, %v597
        %v599 = vsel %vm591, %v578, %v581
        %v600 = vsel %vm594, %v587, 920167782
        %v601 = vsel %vm593, %v584, %v600
        %v602 = vsel %vm592, %v599, %v601
        %v603 = vsel %vm591, %v581, %v584
        %v604 = vsel %vm594, %v590, 1326507024
        %v605 = vsel %vm593, %v587, %v604
        %v606 = vsel %vm592, %v603, %v605
        %v607 = vshll.u32 %v567, 8
        %v608 = vmul.u32.u64.compose %v607, %v606
        %v609 = vextract.low.u32 %v608
        %v610 = vextract.high.u32 %v608
        %v611 = vmul.u32.u64.compose %v607, %v602
        %v612 = vextract.low.u32 %v611
        %v613 = vextract.high.u32 %v611
        %v614 = vmul.u32 %v607, %v598
        %v615 = vadd.s32 %v610, %v612
        %vm616 = vc.u32 %v610, %v612
        %v617 = vadd.s32 %v613, 1
        %v618 = vsel %vm616, %v617, %v613
        %v619 = vadd.s32 %v614, %v618
        %v620 = vadd.s32 %v619, 536870912
        %v621 = vshrl.u32 %v620, 30
        %v622 = vshll.u32 %v621, 30
        %v623 = vsub.s32 %v619, %v622
        %vm624 = vcmp.lt.s32.totalorder %v623, 0
        %v625 = vsub.s32 0, %v623
        %v626 = vsel %vm624, %v625, %v623
        %v627 = vclz %v626
        %v628 = vsub.s32 %v627, 2
        %vm629 = vcmp.gt.s32.totalorder 0, %v628
        %v630 = vsel %vm629, 0, %v628
        %v631 = vsub.s32 32, %v630
        %v632 = vshll.u32 %v623, %v630
        %v633 = vshrl.u32 %v615, %v631
        %v634 = vor.u32 %v632, %v633
        %v635 = vsub.s32 4294967266, %v630
        %v636 = vadd.s32 %v635, 127
        %v637 = vshll.u32 %v636, 23
        %v638 = vor.u32 4788187, %v637
        %v639 = vand.u32 2147483647, %v638
        %v641 = vcvt.s32.f32 %v634
        %v642 = vmul.f32 %v641, %v639
        %v643 = vxor.u32 %v642, 2147483648
        %v644 = vsel %vm561, %v643, %v642
        %v645 = vsub.s32 4, %v621
        %v646 = vsel %vm561, %v645, %v621
        %v647 = vsel %vm560, %v558, %v644
        %v648 = vsel %vm560, 0, %v646
        %v649 = vcosq.f32.pop %v647
        %v650 = vsinq.f32.pop %v647
        %vm651 = vweird.f32 %v558
        %v652 = vadd.s32 %v648, 3
        %v653 = vand.u32 %v652, 3
        %vm654 = vcmp.lt.s32.totalorder %v653, 2
        %vm655 = vcmp.eq.s32.totalorder %v653, 0
        %v656 = vxor.u32 %v650, 2147483648
        %v657 = vsel %vm655, %v649, %v656
        %vm658 = vcmp.eq.s32.totalorder %v653, 2
        %v659 = vxor.u32 %v649, 2147483648
        %v660 = vsel %vm658, %v659, %v650
        %v661 = vsel %vm654, %v657, %v660
        %v662 = vsel %vm651, nan, %v661
        %v663 = vmul.f32 %v137, 428.93213
        %v664 = vand.u32 2147483647, %v663
        %vm665 = vcmp.le.f32.partialorder %v664, 0.7853982
        %vm666 = vcmp.lt.s32.totalorder %v663, 0
        %v667 = vand.u32 %v663, 2139095040
        %v668 = vshrl.u32 %v667, 23
        %v669 = vsub.s32 %v668, 127
        %v670 = vand.u32 2147483647, %v663
        %v671 = vand.u32 %v670, 8388607
        %v672 = vor.u32 %v671, 8388608
        %v673 = vsub.s32 0, %v672
        %v674 = vadd.s32 %v669, 1
        %vm675 = vcmp.gt.s32.totalorder %v674, 0
        %v676 = vsel %vm675, %v674, 0
        %v677 = vshrl.u32 %v676, 5
        %v678 = vand.u32 %v676, 31
        %v679 = vsub.s32 32, %v678
        %v680 = vshrl.u32 683565275, %v679
        %v681 = vshll.u32 683565275, %v678
        %v682 = vshrl.u32 2475754826, %v679
        %v683 = vor.u32 %v681, %v682
        %v684 = vshll.u32 2475754826, %v678
        %v685 = vshrl.u32 2131351028, %v679
        %v686 = vor.u32 %v684, %v685
        %v687 = vshll.u32 2131351028, %v678
        %v688 = vshrl.u32 2102212464, %v679
        %v689 = vor.u32 %v687, %v688
        %v690 = vshll.u32 2102212464, %v678
        %v691 = vshrl.u32 920167782, %v679
        %v692 = vor.u32 %v690, %v691
        %v693 = vshll.u32 920167782, %v678
        %v694 = vshrl.u32 1326507024, %v679
        %v695 = vor.u32 %v693, %v694
        %vm696 = vcmp.lt.s32.totalorder %v677, 1
        %vm697 = vcmp.lt.s32.totalorder %v677, 2
        %vm698 = vcmp.lt.s32.totalorder %v677, 3
        %vm699 = vcmp.lt.s32.totalorder %v677, 4
        %v700 = vsel %vm696, %v680, %v683
        %v701 = vsel %vm699, %v689, 2102212464
        %v702 = vsel %vm698, %v686, %v701
        %v703 = vsel %vm697, %v700, %v702
        %v704 = vsel %vm696, %v683, %v686
        %v705 = vsel %vm699, %v692, 920167782
        %v706 = vsel %vm698, %v689, %v705
        %v707 = vsel %vm697, %v704, %v706
        %v708 = vsel %vm696, %v686, %v689
        %v709 = vsel %vm699, %v695, 1326507024
        %v710 = vsel %vm698, %v692, %v709
        %v711 = vsel %vm697, %v708, %v710
        %v712 = vshll.u32 %v672, 8
        %v713 = vmul.u32.u64.compose %v712, %v711
        %v714 = vextract.low.u32 %v713
        %v715 = vextract.high.u32 %v713
        %v716 = vmul.u32.u64.compose %v712, %v707
        %v717 = vextract.low.u32 %v716
        %v718 = vextract.high.u32 %v716
        %v719 = vmul.u32 %v712, %v703
        %v720 = vadd.s32 %v715, %v717
        %vm721 = vc.u32 %v715, %v717
        %v722 = vadd.s32 %v718, 1
        %v723 = vsel %vm721, %v722, %v718
        %v724 = vadd.s32 %v719, %v723
        %v725 = vadd.s32 %v724, 536870912
        %v726 = vshrl.u32 %v725, 30
        %v727 = vshll.u32 %v726, 30
        %v728 = vsub.s32 %v724, %v727
        %vm729 = vcmp.lt.s32.totalorder %v728, 0
        %v730 = vsub.s32 0, %v728
        %v731 = vsel %vm729, %v730, %v728
        %v732 = vclz %v731
        %v733 = vsub.s32 %v732, 2
        %vm734 = vcmp.gt.s32.totalorder 0, %v733
        %v735 = vsel %vm734, 0, %v733
        %v736 = vsub.s32 32, %v735
        %v737 = vshll.u32 %v728, %v735
        %v738 = vshrl.u32 %v720, %v736
        %v739 = vor.u32 %v737, %v738
        %v740 = vsub.s32 4294967266, %v735
        %v741 = vadd.s32 %v740, 127
        %v742 = vshll.u32 %v741, 23
        %v743 = vor.u32 4788187, %v742
        %v744 = vand.u32 2147483647, %v743
        %v746 = vcvt.s32.f32 %v739
        %v747 = vmul.f32 %v746, %v744
        %v748 = vxor.u32 %v747, 2147483648
        %v749 = vsel %vm666, %v748, %v747
        %v750 = vsub.s32 4, %v726
        %v751 = vsel %vm666, %v750, %v726
        %v752 = vsel %vm665, %v663, %v749
        %v753 = vsel %vm665, 0, %v751
        %v754 = vcosq.f32.pop %v752
        %v755 = vsinq.f32.pop %v752
        %vm756 = vweird.f32 %v663
        %v757 = vadd.s32 %v753, 3
        %v758 = vand.u32 %v757, 3
        %vm759 = vcmp.lt.s32.totalorder %v758, 2
        %vm760 = vcmp.eq.s32.totalorder %v758, 0
        %v761 = vxor.u32 %v755, 2147483648
        %v762 = vsel %vm760, %v754, %v761
        %vm763 = vcmp.eq.s32.totalorder %v758, 2
        %v764 = vxor.u32 %v754, 2147483648
        %v765 = vsel %vm763, %v764, %v755
        %v766 = vsel %vm759, %v762, %v765
        %v767 = vsel %vm756, nan, %v766
        %v768 = vand.u32 2147483647, %v138
        %vm769 = vcmp.le.f32.partialorder %v768, 0.7853982
        %vm770 = vcmp.lt.s32.totalorder %v138, 0
        %v771 = vand.u32 %v138, 2139095040
        %v772 = vshrl.u32 %v771, 23
        %v773 = vsub.s32 %v772, 127
        %v774 = vand.u32 2147483647, %v138
        %v775 = vand.u32 %v774, 8388607
        %v776 = vor.u32 %v775, 8388608
        %v777 = vsub.s32 0, %v776
        %v778 = vadd.s32 %v773, 1
        %vm779 = vcmp.gt.s32.totalorder %v778, 0
        %v780 = vsel %vm779, %v778, 0
        %v781 = vshrl.u32 %v780, 5
        %v782 = vand.u32 %v780, 31
        %v783 = vsub.s32 32, %v782
        %v784 = vshrl.u32 683565275, %v783
        %v785 = vshll.u32 683565275, %v782
        %v786 = vshrl.u32 2475754826, %v783
        %v787 = vor.u32 %v785, %v786
        %v788 = vshll.u32 2475754826, %v782
        %v789 = vshrl.u32 2131351028, %v783
        %v790 = vor.u32 %v788, %v789
        %v791 = vshll.u32 2131351028, %v782
        %v792 = vshrl.u32 2102212464, %v783
        %v793 = vor.u32 %v791, %v792
        %v794 = vshll.u32 2102212464, %v782
        %v795 = vshrl.u32 920167782, %v783
        %v796 = vor.u32 %v794, %v795
        %v797 = vshll.u32 920167782, %v782
        %v798 = vshrl.u32 1326507024, %v783
        %v799 = vor.u32 %v797, %v798
        %vm800 = vcmp.lt.s32.totalorder %v781, 1
        %vm801 = vcmp.lt.s32.totalorder %v781, 2
        %vm802 = vcmp.lt.s32.totalorder %v781, 3
        %vm803 = vcmp.lt.s32.totalorder %v781, 4
        %v804 = vsel %vm800, %v784, %v787
        %v805 = vsel %vm803, %v793, 2102212464
        %v806 = vsel %vm802, %v790, %v805
        %v807 = vsel %vm801, %v804, %v806
        %v808 = vsel %vm800, %v787, %v790
        %v809 = vsel %vm803, %v796, 920167782
        %v810 = vsel %vm802, %v793, %v809
        %v811 = vsel %vm801, %v808, %v810
        %v812 = vsel %vm800, %v790, %v793
        %v813 = vsel %vm803, %v799, 1326507024
        %v814 = vsel %vm802, %v796, %v813
        %v815 = vsel %vm801, %v812, %v814
        %v816 = vshll.u32 %v776, 8
        %v817 = vmul.u32.u64.compose %v816, %v815
        %v818 = vextract.low.u32 %v817
        %v819 = vextract.high.u32 %v817
        %v820 = vmul.u32.u64.compose %v816, %v811
        %v821 = vextract.low.u32 %v820
        %v822 = vextract.high.u32 %v820
        %v823 = vmul.u32 %v816, %v807
        %v824 = vadd.s32 %v819, %v821
        %vm825 = vc.u32 %v819, %v821
        %v826 = vadd.s32 %v822, 1
        %v827 = vsel %vm825, %v826, %v822
        %v828 = vadd.s32 %v823, %v827
        %v829 = vadd.s32 %v828, 536870912
        %v830 = vshrl.u32 %v829, 30
        %v831 = vshll.u32 %v830, 30
        %v832 = vsub.s32 %v828, %v831
        %vm833 = vcmp.lt.s32.totalorder %v832, 0
        %v834 = vsub.s32 0, %v832
        %v835 = vsel %vm833, %v834, %v832
        %v836 = vclz %v835
        %v837 = vsub.s32 %v836, 2
        %vm838 = vcmp.gt.s32.totalorder 0, %v837
        %v839 = vsel %vm838, 0, %v837
        %v840 = vsub.s32 32, %v839
        %v841 = vshll.u32 %v832, %v839
        %v842 = vshrl.u32 %v824, %v840
        %v843 = vor.u32 %v841, %v842
        %v844 = vsub.s32 4294967266, %v839
        %v845 = vadd.s32 %v844, 127
        %v846 = vshll.u32 %v845, 23
        %v847 = vor.u32 4788187, %v846
        %v848 = vand.u32 2147483647, %v847
        %v850 = vcvt.s32.f32 %v843
        %v851 = vmul.f32 %v850, %v848
        %v852 = vxor.u32 %v851, 2147483648
        %v853 = vsel %vm770, %v852, %v851
        %v854 = vsub.s32 4, %v830
        %v855 = vsel %vm770, %v854, %v830
        %v856 = vsel %vm769, %v138, %v853
        %v857 = vsel %vm769, 0, %v855
        %v858 = vcosq.f32.pop %v856
        %v859 = vsinq.f32.pop %v856
        %vm860 = vweird.f32 %v138
        %v861 = vand.u32 %v857, 3
        %vm862 = vcmp.lt.s32.totalorder %v861, 2
        %vm863 = vcmp.eq.s32.totalorder %v861, 0
        %v864 = vxor.u32 %v859, 2147483648
        %v865 = vsel %vm863, %v858, %v864
        %vm866 = vcmp.eq.s32.totalorder %v861, 2
        %v867 = vxor.u32 %v858, 2147483648
        %v868 = vsel %vm866, %v867, %v859
        %v869 = vsel %vm862, %v865, %v868
        %v870 = vsel %vm860, nan, %v869
        %v871 = vand.u32 2147483647, %v243
        %vm872 = vcmp.le.f32.partialorder %v871, 0.7853982
        %vm873 = vcmp.lt.s32.totalorder %v243, 0
        %v874 = vand.u32 %v243, 2139095040
        %v875 = vshrl.u32 %v874, 23
        %v876 = vsub.s32 %v875, 127
        %v877 = vand.u32 2147483647, %v243
        %v878 = vand.u32 %v877, 8388607
        %v879 = vor.u32 %v878, 8388608
        %v880 = vsub.s32 0, %v879
        %v881 = vadd.s32 %v876, 1
        %vm882 = vcmp.gt.s32.totalorder %v881, 0
        %v883 = vsel %vm882, %v881, 0
        %v884 = vshrl.u32 %v883, 5
        %v885 = vand.u32 %v883, 31
        %v886 = vsub.s32 32, %v885
        %v887 = vshrl.u32 683565275, %v886
        %v888 = vshll.u32 683565275, %v885
        %v889 = vshrl.u32 2475754826, %v886
        %v890 = vor.u32 %v888, %v889
        %v891 = vshll.u32 2475754826, %v885
        %v892 = vshrl.u32 2131351028, %v886
        %v893 = vor.u32 %v891, %v892
        %v894 = vshll.u32 2131351028, %v885
        %v895 = vshrl.u32 2102212464, %v886
        %v896 = vor.u32 %v894, %v895
        %v897 = vshll.u32 2102212464, %v885
        %v898 = vshrl.u32 920167782, %v886
        %v899 = vor.u32 %v897, %v898
        %v900 = vshll.u32 920167782, %v885
        %v901 = vshrl.u32 1326507024, %v886
        %v902 = vor.u32 %v900, %v901
        %vm903 = vcmp.lt.s32.totalorder %v884, 1
        %vm904 = vcmp.lt.s32.totalorder %v884, 2
        %vm905 = vcmp.lt.s32.totalorder %v884, 3
        %vm906 = vcmp.lt.s32.totalorder %v884, 4
        %v907 = vsel %vm903, %v887, %v890
        %v908 = vsel %vm906, %v896, 2102212464
        %v909 = vsel %vm905, %v893, %v908
        %v910 = vsel %vm904, %v907, %v909
        %v911 = vsel %vm903, %v890, %v893
        %v912 = vsel %vm906, %v899, 920167782
        %v913 = vsel %vm905, %v896, %v912
        %v914 = vsel %vm904, %v911, %v913
        %v915 = vsel %vm903, %v893, %v896
        %v916 = vsel %vm906, %v902, 1326507024
        %v917 = vsel %vm905, %v899, %v916
        %v918 = vsel %vm904, %v915, %v917
        %v919 = vshll.u32 %v879, 8
        %v920 = vmul.u32.u64.compose %v919, %v918
        %v921 = vextract.low.u32 %v920
        %v922 = vextract.high.u32 %v920
        %v923 = vmul.u32.u64.compose %v919, %v914
        %v924 = vextract.low.u32 %v923
        %v925 = vextract.high.u32 %v923
        %v926 = vmul.u32 %v919, %v910
        %v927 = vadd.s32 %v922, %v924
        %vm928 = vc.u32 %v922, %v924
        %v929 = vadd.s32 %v925, 1
        %v930 = vsel %vm928, %v929, %v925
        %v931 = vadd.s32 %v926, %v930
        %v932 = vadd.s32 %v931, 536870912
        %v933 = vshrl.u32 %v932, 30
        %v934 = vshll.u32 %v933, 30
        %v935 = vsub.s32 %v931, %v934
        %vm936 = vcmp.lt.s32.totalorder %v935, 0
        %v937 = vsub.s32 0, %v935
        %v938 = vsel %vm936, %v937, %v935
        %v939 = vclz %v938
        %v940 = vsub.s32 %v939, 2
        %vm941 = vcmp.gt.s32.totalorder 0, %v940
        %v942 = vsel %vm941, 0, %v940
        %v943 = vsub.s32 32, %v942
        %v944 = vshll.u32 %v935, %v942
        %v945 = vshrl.u32 %v927, %v943
        %v946 = vor.u32 %v944, %v945
        %v947 = vsub.s32 4294967266, %v942
        %v948 = vadd.s32 %v947, 127
        %v949 = vshll.u32 %v948, 23
        %v950 = vor.u32 4788187, %v949
        %v951 = vand.u32 2147483647, %v950
        %v953 = vcvt.s32.f32 %v946
        %v954 = vmul.f32 %v953, %v951
        %v955 = vxor.u32 %v954, 2147483648
        %v956 = vsel %vm873, %v955, %v954
        %v957 = vsub.s32 4, %v933
        %v958 = vsel %vm873, %v957, %v933
        %v959 = vsel %vm872, %v243, %v956
        %v960 = vsel %vm872, 0, %v958
        %v961 = vcosq.f32.pop %v959
        %v962 = vsinq.f32.pop %v959
        %vm963 = vweird.f32 %v243
        %v964 = vand.u32 %v960, 3
        %vm965 = vcmp.lt.s32.totalorder %v964, 2
        %vm966 = vcmp.eq.s32.totalorder %v964, 0
        %v967 = vxor.u32 %v962, 2147483648
        %v968 = vsel %vm966, %v961, %v967
        %vm969 = vcmp.eq.s32.totalorder %v964, 2
        %v970 = vxor.u32 %v961, 2147483648
        %v971 = vsel %vm969, %v970, %v962
        %v972 = vsel %vm965, %v968, %v971
        %v973 = vsel %vm963, nan, %v972
        %v974 = vand.u32 2147483647, %v348
        %vm975 = vcmp.le.f32.partialorder %v974, 0.7853982
        %vm976 = vcmp.lt.s32.totalorder %v348, 0
        %v977 = vand.u32 %v348, 2139095040
        %v978 = vshrl.u32 %v977, 23
        %v979 = vsub.s32 %v978, 127
        %v980 = vand.u32 2147483647, %v348
        %v981 = vand.u32 %v980, 8388607
        %v982 = vor.u32 %v981, 8388608
        %v983 = vsub.s32 0, %v982
        %v984 = vadd.s32 %v979, 1
        %vm985 = vcmp.gt.s32.totalorder %v984, 0
        %v986 = vsel %vm985, %v984, 0
        %v987 = vshrl.u32 %v986, 5
        %v988 = vand.u32 %v986, 31
        %v989 = vsub.s32 32, %v988
        %v990 = vshrl.u32 683565275, %v989
        %v991 = vshll.u32 683565275, %v988
        %v992 = vshrl.u32 2475754826, %v989
        %v993 = vor.u32 %v991, %v992
        %v994 = vshll.u32 2475754826, %v988
        %v995 = vshrl.u32 2131351028, %v989
        %v996 = vor.u32 %v994, %v995
        %v997 = vshll.u32 2131351028, %v988
        %v998 = vshrl.u32 2102212464, %v989
        %v999 = vor.u32 %v997, %v998
        %v1000 = vshll.u32 2102212464, %v988
        %v1001 = vshrl.u32 920167782, %v989
        %v1002 = vor.u32 %v1000, %v1001
        %v1003 = vshll.u32 920167782, %v988
        %v1004 = vshrl.u32 1326507024, %v989
        %v1005 = vor.u32 %v1003, %v1004
        %vm1006 = vcmp.lt.s32.totalorder %v987, 1
        %vm1007 = vcmp.lt.s32.totalorder %v987, 2
        %vm1008 = vcmp.lt.s32.totalorder %v987, 3
        %vm1009 = vcmp.lt.s32.totalorder %v987, 4
        %v1010 = vsel %vm1006, %v990, %v993
        %v1011 = vsel %vm1009, %v999, 2102212464
        %v1012 = vsel %vm1008, %v996, %v1011
        %v1013 = vsel %vm1007, %v1010, %v1012
        %v1014 = vsel %vm1006, %v993, %v996
        %v1015 = vsel %vm1009, %v1002, 920167782
        %v1016 = vsel %vm1008, %v999, %v1015
        %v1017 = vsel %vm1007, %v1014, %v1016
        %v1018 = vsel %vm1006, %v996, %v999
        %v1019 = vsel %vm1009, %v1005, 1326507024
        %v1020 = vsel %vm1008, %v1002, %v1019
        %v1021 = vsel %vm1007, %v1018, %v1020
        %v1022 = vshll.u32 %v982, 8
        %v1023 = vmul.u32.u64.compose %v1022, %v1021
        %v1024 = vextract.low.u32 %v1023
        %v1025 = vextract.high.u32 %v1023
        %v1026 = vmul.u32.u64.compose %v1022, %v1017
        %v1027 = vextract.low.u32 %v1026
        %v1028 = vextract.high.u32 %v1026
        %v1029 = vmul.u32 %v1022, %v1013
        %v1030 = vadd.s32 %v1025, %v1027
        %vm1031 = vc.u32 %v1025, %v1027
        %v1032 = vadd.s32 %v1028, 1
        %v1033 = vsel %vm1031, %v1032, %v1028
        %v1034 = vadd.s32 %v1029, %v1033
        %v1035 = vadd.s32 %v1034, 536870912
        %v1036 = vshrl.u32 %v1035, 30
        %v1037 = vshll.u32 %v1036, 30
        %v1038 = vsub.s32 %v1034, %v1037
        %vm1039 = vcmp.lt.s32.totalorder %v1038, 0
        %v1040 = vsub.s32 0, %v1038
        %v1041 = vsel %vm1039, %v1040, %v1038
        %v1042 = vclz %v1041
        %v1043 = vsub.s32 %v1042, 2
        %vm1044 = vcmp.gt.s32.totalorder 0, %v1043
        %v1045 = vsel %vm1044, 0, %v1043
        %v1046 = vsub.s32 32, %v1045
        %v1047 = vshll.u32 %v1038, %v1045
        %v1048 = vshrl.u32 %v1030, %v1046
        %v1049 = vor.u32 %v1047, %v1048
        %v1050 = vsub.s32 4294967266, %v1045
        %v1051 = vadd.s32 %v1050, 127
        %v1052 = vshll.u32 %v1051, 23
        %v1053 = vor.u32 4788187, %v1052
        %v1054 = vand.u32 2147483647, %v1053
        %v1056 = vcvt.s32.f32 %v1049
        %v1057 = vmul.f32 %v1056, %v1054
        %v1058 = vxor.u32 %v1057, 2147483648
        %v1059 = vsel %vm976, %v1058, %v1057
        %v1060 = vsub.s32 4, %v1036
        %v1061 = vsel %vm976, %v1060, %v1036
        %v1062 = vsel %vm975, %v348, %v1059
        %v1063 = vsel %vm975, 0, %v1061
        %v1064 = vcosq.f32.pop %v1062
        %v1065 = vsinq.f32.pop %v1062
        %vm1066 = vweird.f32 %v348
        %v1067 = vand.u32 %v1063, 3
        %vm1068 = vcmp.lt.s32.totalorder %v1067, 2
        %vm1069 = vcmp.eq.s32.totalorder %v1067, 0
        %v1070 = vxor.u32 %v1065, 2147483648
        %v1071 = vsel %vm1069, %v1064, %v1070
        %vm1072 = vcmp.eq.s32.totalorder %v1067, 2
        %v1073 = vxor.u32 %v1064, 2147483648
        %v1074 = vsel %vm1072, %v1073, %v1065
        %v1075 = vsel %vm1068, %v1071, %v1074
        %v1076 = vsel %vm1066, nan, %v1075
        %v1077 = vand.u32 2147483647, %v453
        %vm1078 = vcmp.le.f32.partialorder %v1077, 0.7853982
        %vm1079 = vcmp.lt.s32.totalorder %v453, 0
        %v1080 = vand.u32 %v453, 2139095040
        %v1081 = vshrl.u32 %v1080, 23
        %v1082 = vsub.s32 %v1081, 127
        %v1083 = vand.u32 2147483647, %v453
        %v1084 = vand.u32 %v1083, 8388607
        %v1085 = vor.u32 %v1084, 8388608
        %v1086 = vsub.s32 0, %v1085
        %v1087 = vadd.s32 %v1082, 1
        %vm1088 = vcmp.gt.s32.totalorder %v1087, 0
        %v1089 = vsel %vm1088, %v1087, 0
        %v1090 = vshrl.u32 %v1089, 5
        %v1091 = vand.u32 %v1089, 31
        %v1092 = vsub.s32 32, %v1091
        %v1093 = vshrl.u32 683565275, %v1092
        %v1094 = vshll.u32 683565275, %v1091
        %v1095 = vshrl.u32 2475754826, %v1092
        %v1096 = vor.u32 %v1094, %v1095
        %v1097 = vshll.u32 2475754826, %v1091
        %v1098 = vshrl.u32 2131351028, %v1092
        %v1099 = vor.u32 %v1097, %v1098
        %v1100 = vshll.u32 2131351028, %v1091
        %v1101 = vshrl.u32 2102212464, %v1092
        %v1102 = vor.u32 %v1100, %v1101
        %v1103 = vshll.u32 2102212464, %v1091
        %v1104 = vshrl.u32 920167782, %v1092
        %v1105 = vor.u32 %v1103, %v1104
        %v1106 = vshll.u32 920167782, %v1091
        %v1107 = vshrl.u32 1326507024, %v1092
        %v1108 = vor.u32 %v1106, %v1107
        %vm1109 = vcmp.lt.s32.totalorder %v1090, 1
        %vm1110 = vcmp.lt.s32.totalorder %v1090, 2
        %vm1111 = vcmp.lt.s32.totalorder %v1090, 3
        %vm1112 = vcmp.lt.s32.totalorder %v1090, 4
        %v1113 = vsel %vm1109, %v1093, %v1096
        %v1114 = vsel %vm1112, %v1102, 2102212464
        %v1115 = vsel %vm1111, %v1099, %v1114
        %v1116 = vsel %vm1110, %v1113, %v1115
        %v1117 = vsel %vm1109, %v1096, %v1099
        %v1118 = vsel %vm1112, %v1105, 920167782
        %v1119 = vsel %vm1111, %v1102, %v1118
        %v1120 = vsel %vm1110, %v1117, %v1119
        %v1121 = vsel %vm1109, %v1099, %v1102
        %v1122 = vsel %vm1112, %v1108, 1326507024
        %v1123 = vsel %vm1111, %v1105, %v1122
        %v1124 = vsel %vm1110, %v1121, %v1123
        %v1125 = vshll.u32 %v1085, 8
        %v1126 = vmul.u32.u64.compose %v1125, %v1124
        %v1127 = vextract.low.u32 %v1126
        %v1128 = vextract.high.u32 %v1126
        %v1129 = vmul.u32.u64.compose %v1125, %v1120
        %v1130 = vextract.low.u32 %v1129
        %v1131 = vextract.high.u32 %v1129
        %v1132 = vmul.u32 %v1125, %v1116
        %v1133 = vadd.s32 %v1128, %v1130
        %vm1134 = vc.u32 %v1128, %v1130
        %v1135 = vadd.s32 %v1131, 1
        %v1136 = vsel %vm1134, %v1135, %v1131
        %v1137 = vadd.s32 %v1132, %v1136
        %v1138 = vadd.s32 %v1137, 536870912
        %v1139 = vshrl.u32 %v1138, 30
        %v1140 = vshll.u32 %v1139, 30
        %v1141 = vsub.s32 %v1137, %v1140
        %vm1142 = vcmp.lt.s32.totalorder %v1141, 0
        %v1143 = vsub.s32 0, %v1141
        %v1144 = vsel %vm1142, %v1143, %v1141
        %v1145 = vclz %v1144
        %v1146 = vsub.s32 %v1145, 2
        %vm1147 = vcmp.gt.s32.totalorder 0, %v1146
        %v1148 = vsel %vm1147, 0, %v1146
        %v1149 = vsub.s32 32, %v1148
        %v1150 = vshll.u32 %v1141, %v1148
        %v1151 = vshrl.u32 %v1133, %v1149
        %v1152 = vor.u32 %v1150, %v1151
        %v1153 = vsub.s32 4294967266, %v1148
        %v1154 = vadd.s32 %v1153, 127
        %v1155 = vshll.u32 %v1154, 23
        %v1156 = vor.u32 4788187, %v1155
        %v1157 = vand.u32 2147483647, %v1156
        %v1159 = vcvt.s32.f32 %v1152
        %v1160 = vmul.f32 %v1159, %v1157
        %v1161 = vxor.u32 %v1160, 2147483648
        %v1162 = vsel %vm1079, %v1161, %v1160
        %v1163 = vsub.s32 4, %v1139
        %v1164 = vsel %vm1079, %v1163, %v1139
        %v1165 = vsel %vm1078, %v453, %v1162
        %v1166 = vsel %vm1078, 0, %v1164
        %v1167 = vcosq.f32.pop %v1165
        %v1168 = vsinq.f32.pop %v1165
        %vm1169 = vweird.f32 %v453
        %v1170 = vand.u32 %v1166, 3
        %vm1171 = vcmp.lt.s32.totalorder %v1170, 2
        %vm1172 = vcmp.eq.s32.totalorder %v1170, 0
        %v1173 = vxor.u32 %v1168, 2147483648
        %v1174 = vsel %vm1172, %v1167, %v1173
        %vm1175 = vcmp.eq.s32.totalorder %v1170, 2
        %v1176 = vxor.u32 %v1167, 2147483648
        %v1177 = vsel %vm1175, %v1176, %v1168
        %v1178 = vsel %vm1171, %v1174, %v1177
        %v1179 = vsel %vm1169, nan, %v1178
        %v1180 = vand.u32 2147483647, %v558
        %vm1181 = vcmp.le.f32.partialorder %v1180, 0.7853982
        %vm1182 = vcmp.lt.s32.totalorder %v558, 0
        %v1183 = vand.u32 %v558, 2139095040
        %v1184 = vshrl.u32 %v1183, 23
        %v1185 = vsub.s32 %v1184, 127
        %v1186 = vand.u32 2147483647, %v558
        %v1187 = vand.u32 %v1186, 8388607
        %v1188 = vor.u32 %v1187, 8388608
        %v1189 = vsub.s32 0, %v1188
        %v1190 = vadd.s32 %v1185, 1
        %vm1191 = vcmp.gt.s32.totalorder %v1190, 0
        %v1192 = vsel %vm1191, %v1190, 0
        %v1193 = vshrl.u32 %v1192, 5
        %v1194 = vand.u32 %v1192, 31
        %v1195 = vsub.s32 32, %v1194
        %v1196 = vshrl.u32 683565275, %v1195
        %v1197 = vshll.u32 683565275, %v1194
        %v1198 = vshrl.u32 2475754826, %v1195
        %v1199 = vor.u32 %v1197, %v1198
        %v1200 = vshll.u32 2475754826, %v1194
        %v1201 = vshrl.u32 2131351028, %v1195
        %v1202 = vor.u32 %v1200, %v1201
        %v1203 = vshll.u32 2131351028, %v1194
        %v1204 = vshrl.u32 2102212464, %v1195
        %v1205 = vor.u32 %v1203, %v1204
        %v1206 = vshll.u32 2102212464, %v1194
        %v1207 = vshrl.u32 920167782, %v1195
        %v1208 = vor.u32 %v1206, %v1207
        %v1209 = vshll.u32 920167782, %v1194
        %v1210 = vshrl.u32 1326507024, %v1195
        %v1211 = vor.u32 %v1209, %v1210
        %vm1212 = vcmp.lt.s32.totalorder %v1193, 1
        %vm1213 = vcmp.lt.s32.totalorder %v1193, 2
        %vm1214 = vcmp.lt.s32.totalorder %v1193, 3
        %vm1215 = vcmp.lt.s32.totalorder %v1193, 4
        %v1216 = vsel %vm1212, %v1196, %v1199
        %v1217 = vsel %vm1215, %v1205, 2102212464
        %v1218 = vsel %vm1214, %v1202, %v1217
        %v1219 = vsel %vm1213, %v1216, %v1218
        %v1220 = vsel %vm1212, %v1199, %v1202
        %v1221 = vsel %vm1215, %v1208, 920167782
        %v1222 = vsel %vm1214, %v1205, %v1221
        %v1223 = vsel %vm1213, %v1220, %v1222
        %v1224 = vsel %vm1212, %v1202, %v1205
        %v1225 = vsel %vm1215, %v1211, 1326507024
        %v1226 = vsel %vm1214, %v1208, %v1225
        %v1227 = vsel %vm1213, %v1224, %v1226
        %v1228 = vshll.u32 %v1188, 8
        %v1229 = vmul.u32.u64.compose %v1228, %v1227
        %v1230 = vextract.low.u32 %v1229
        %v1231 = vextract.high.u32 %v1229
        %v1232 = vmul.u32.u64.compose %v1228, %v1223
        %v1233 = vextract.low.u32 %v1232
        %v1234 = vextract.high.u32 %v1232
        %v1235 = vmul.u32 %v1228, %v1219
        %v1236 = vadd.s32 %v1231, %v1233
        %vm1237 = vc.u32 %v1231, %v1233
        %v1238 = vadd.s32 %v1234, 1
        %v1239 = vsel %vm1237, %v1238, %v1234
        %v1240 = vadd.s32 %v1235, %v1239
        %v1241 = vadd.s32 %v1240, 536870912
        %v1242 = vshrl.u32 %v1241, 30
        %v1243 = vshll.u32 %v1242, 30
        %v1244 = vsub.s32 %v1240, %v1243
        %vm1245 = vcmp.lt.s32.totalorder %v1244, 0
        %v1246 = vsub.s32 0, %v1244
        %v1247 = vsel %vm1245, %v1246, %v1244
        %v1248 = vclz %v1247
        %v1249 = vsub.s32 %v1248, 2
        %vm1250 = vcmp.gt.s32.totalorder 0, %v1249
        %v1251 = vsel %vm1250, 0, %v1249
        %v1252 = vsub.s32 32, %v1251
        %v1253 = vshll.u32 %v1244, %v1251
        %v1254 = vshrl.u32 %v1236, %v1252
        %v1255 = vor.u32 %v1253, %v1254
        %v1256 = vsub.s32 4294967266, %v1251
        %v1257 = vadd.s32 %v1256, 127
        %v1258 = vshll.u32 %v1257, 23
        %v1259 = vor.u32 4788187, %v1258
        %v1260 = vand.u32 2147483647, %v1259
        %v1262 = vcvt.s32.f32 %v1255
        %v1263 = vmul.f32 %v1262, %v1260
        %v1264 = vxor.u32 %v1263, 2147483648
        %v1265 = vsel %vm1182, %v1264, %v1263
        %v1266 = vsub.s32 4, %v1242
        %v1267 = vsel %vm1182, %v1266, %v1242
        %v1268 = vsel %vm1181, %v558, %v1265
        %v1269 = vsel %vm1181, 0, %v1267
        %v1270 = vcosq.f32.pop %v1268
        %v1271 = vsinq.f32.pop %v1268
        %vm1272 = vweird.f32 %v558
        %v1273 = vand.u32 %v1269, 3
        %vm1274 = vcmp.lt.s32.totalorder %v1273, 2
        %vm1275 = vcmp.eq.s32.totalorder %v1273, 0
        %v1276 = vxor.u32 %v1271, 2147483648
        %v1277 = vsel %vm1275, %v1270, %v1276
        %vm1278 = vcmp.eq.s32.totalorder %v1273, 2
        %v1279 = vxor.u32 %v1270, 2147483648
        %v1280 = vsel %vm1278, %v1279, %v1271
        %v1281 = vsel %vm1274, %v1277, %v1280
        %v1282 = vsel %vm1272, nan, %v1281
        %v1283 = vand.u32 2147483647, %v663
        %vm1284 = vcmp.le.f32.partialorder %v1283, 0.7853982
        %vm1285 = vcmp.lt.s32.totalorder %v663, 0
        %v1286 = vand.u32 %v663, 2139095040
        %v1287 = vshrl.u32 %v1286, 23
        %v1288 = vsub.s32 %v1287, 127
        %v1289 = vand.u32 2147483647, %v663
        %v1290 = vand.u32 %v1289, 8388607
        %v1291 = vor.u32 %v1290, 8388608
        %v1292 = vsub.s32 0, %v1291
        %v1293 = vadd.s32 %v1288, 1
        %vm1294 = vcmp.gt.s32.totalorder %v1293, 0
        %v1295 = vsel %vm1294, %v1293, 0
        %v1296 = vshrl.u32 %v1295, 5
        %v1297 = vand.u32 %v1295, 31
        %v1298 = vsub.s32 32, %v1297
        %v1299 = vshrl.u32 683565275, %v1298
        %v1300 = vshll.u32 683565275, %v1297
        %v1301 = vshrl.u32 2475754826, %v1298
        %v1302 = vor.u32 %v1300, %v1301
        %v1303 = vshll.u32 2475754826, %v1297
        %v1304 = vshrl.u32 2131351028, %v1298
        %v1305 = vor.u32 %v1303, %v1304
        %v1306 = vshll.u32 2131351028, %v1297
        %v1307 = vshrl.u32 2102212464, %v1298
        %v1308 = vor.u32 %v1306, %v1307
        %v1309 = vshll.u32 2102212464, %v1297
        %v1310 = vshrl.u32 920167782, %v1298
        %v1311 = vor.u32 %v1309, %v1310
        %v1312 = vshll.u32 920167782, %v1297
        %v1313 = vshrl.u32 1326507024, %v1298
        %v1314 = vor.u32 %v1312, %v1313
        %vm1315 = vcmp.lt.s32.totalorder %v1296, 1
        %vm1316 = vcmp.lt.s32.totalorder %v1296, 2
        %vm1317 = vcmp.lt.s32.totalorder %v1296, 3
        %vm1318 = vcmp.lt.s32.totalorder %v1296, 4
        %v1319 = vsel %vm1315, %v1299, %v1302
        %v1320 = vsel %vm1318, %v1308, 2102212464
        %v1321 = vsel %vm1317, %v1305, %v1320
        %v1322 = vsel %vm1316, %v1319, %v1321
        %v1323 = vsel %vm1315, %v1302, %v1305
        %v1324 = vsel %vm1318, %v1311, 920167782
        %v1325 = vsel %vm1317, %v1308, %v1324
        %v1326 = vsel %vm1316, %v1323, %v1325
        %v1327 = vsel %vm1315, %v1305, %v1308
        %v1328 = vsel %vm1318, %v1314, 1326507024
        %v1329 = vsel %vm1317, %v1311, %v1328
        %v1330 = vsel %vm1316, %v1327, %v1329
        %v1331 = vshll.u32 %v1291, 8
        %v1332 = vmul.u32.u64.compose %v1331, %v1330
        %v1333 = vextract.low.u32 %v1332
        %v1334 = vextract.high.u32 %v1332
        %v1335 = vmul.u32.u64.compose %v1331, %v1326
        %v1336 = vextract.low.u32 %v1335
        %v1337 = vextract.high.u32 %v1335
        %v1338 = vmul.u32 %v1331, %v1322
        %v1339 = vadd.s32 %v1334, %v1336
        %vm1340 = vc.u32 %v1334, %v1336
        %v1341 = vadd.s32 %v1337, 1
        %v1342 = vsel %vm1340, %v1341, %v1337
        %v1343 = vadd.s32 %v1338, %v1342
        %v1344 = vadd.s32 %v1343, 536870912
        %v1345 = vshrl.u32 %v1344, 30
        %v1346 = vshll.u32 %v1345, 30
        %v1347 = vsub.s32 %v1343, %v1346
        %vm1348 = vcmp.lt.s32.totalorder %v1347, 0
        %v1349 = vsub.s32 0, %v1347
        %v1350 = vsel %vm1348, %v1349, %v1347
        %v1351 = vclz %v1350
        %v1352 = vsub.s32 %v1351, 2
        %vm1353 = vcmp.gt.s32.totalorder 0, %v1352
        %v1354 = vsel %vm1353, 0, %v1352
        %v1355 = vsub.s32 32, %v1354
        %v1356 = vshll.u32 %v1347, %v1354
        %v1357 = vshrl.u32 %v1339, %v1355
        %v1358 = vor.u32 %v1356, %v1357
        %v1359 = vsub.s32 4294967266, %v1354
        %v1360 = vadd.s32 %v1359, 127
        %v1361 = vshll.u32 %v1360, 23
        %v1362 = vor.u32 4788187, %v1361
        %v1363 = vand.u32 2147483647, %v1362
        %v1365 = vcvt.s32.f32 %v1358
        %v1366 = vmul.f32 %v1365, %v1363
        %v1367 = vxor.u32 %v1366, 2147483648
        %v1368 = vsel %vm1285, %v1367, %v1366
        %v1369 = vsub.s32 4, %v1345
        %v1370 = vsel %vm1285, %v1369, %v1345
        %v1371 = vsel %vm1284, %v663, %v1368
        %v1372 = vsel %vm1284, 0, %v1370
        %v1373 = vcosq.f32.pop %v1371
        %v1374 = vsinq.f32.pop %v1371
        %vm1375 = vweird.f32 %v663
        %v1376 = vand.u32 %v1372, 3
        %vm1377 = vcmp.lt.s32.totalorder %v1376, 2
        %vm1378 = vcmp.eq.s32.totalorder %v1376, 0
        %v1379 = vxor.u32 %v1374, 2147483648
        %v1380 = vsel %vm1378, %v1373, %v1379
        %vm1381 = vcmp.eq.s32.totalorder %v1376, 2
        %v1382 = vxor.u32 %v1373, 2147483648
        %v1383 = vsel %vm1381, %v1382, %v1374
        %v1384 = vsel %vm1377, %v1380, %v1383
        %v1385 = vsel %vm1375, nan, %v1384
        %v1387 = vlaneseq
        %v1388 = vshrl.u32 %v1387, 7
        %v1389 = vsub.s32 0, %v1388
        %v1390 = vrot.slane %v347, %v1389
        %v1393 = vlaneseq
        %v1394 = vshrl.u32 %v1393, 7
        %v1395 = vsub.s32 0, %v1394
        %v1396 = vrot.slane %v452, %v1395
        %v1399 = vlaneseq
        %v1400 = vshrl.u32 %v1399, 7
        %v1401 = vsub.s32 0, %v1400
        %v1402 = vrot.slane %v557, %v1401
        %v1405 = vlaneseq
        %v1406 = vshrl.u32 %v1405, 7
        %v1407 = vsub.s32 0, %v1406
        %v1408 = vrot.slane %v662, %v1407
        %v1411 = vlaneseq
        %v1412 = vshrl.u32 %v1411, 7
        %v1413 = vsub.s32 0, %v1412
        %v1414 = vrot.slane %v767, %v1413
        %v1417 = vlaneseq
        %v1418 = vshrl.u32 %v1417, 7
        %v1419 = vsub.s32 0, %v1418
        %v1420 = vrot.slane %v870, %v1419
        %v1423 = vlaneseq
        %v1424 = vshrl.u32 %v1423, 7
        %v1425 = vsub.s32 0, %v1424
        %v1426 = vrot.slane %v973, %v1425
        %v1429 = vlaneseq
        %v1430 = vshrl.u32 %v1429, 7
        %v1431 = vsub.s32 0, %v1430
        %v1432 = vrot.slane %v1179, %v1431
        %v1435 = vlaneseq
        %v1436 = vshrl.u32 %v1435, 7
        %v1437 = vsub.s32 0, %v1436
        %v1438 = vrot.slane %v1282, %v1437
        %v1441 = vlaneseq
        %v1442 = vshrl.u32 %v1441, 7
        %v1443 = vsub.s32 0, %v1442
        %v1444 = vrot.slane %v1385, %v1443
        %vm1446 = vcmask 1040384
        %v1447 = vsel %vm1446, %v242, %v1390
        %vm1448 = vcmask 1041408
        %v1449 = vsel %vm1448, %v1447, %v1396
        %vm1450 = vcmask 1042432
        %v1451 = vsel %vm1450, %v1449, %v1402
        %vm1452 = vcmask 1043456
        %v1453 = vsel %vm1452, %v1451, %v1408
        %vm1454 = vcmask 1044480
        %v1455 = vsel %vm1454, %v1453, %v1414
        %vm1456 = vcmask 1045504
        %v1457 = vsel %vm1456, %v1455, %v1420
        %vm1458 = vcmask 1046528
        %v1459 = vsel %vm1458, %v1457, %v1426
        %v1460 = vsel %vm1446, %v1076, %v1432
        %v1461 = vsel %vm1448, %v1460, %v1438
        %v1462 = vsel %vm1450, %v1461, %v1444
        %1463 = vst [vmem:[%s128] sm:$0xff] %v1459
        %1464 = vst [vmem:[%s128 + $0x8] sm:$0xf] %v1462
        %s1465 = sand.u32 %s52, 1
        %s1466 = scalar_lea.sflag [#allocation4], %s1465
        %s1467 = sand.u32 %s52, 1
        %s1468 = smul.addr %s1467, 16
        %s1469 = scalar_lea.vmem [#allocation5], %s1468
        // Predicated region
        $region29: #{tpu_custom_call.1} parent=23 // pred_check
          %p1470 = pneg %p62
        $region30: #{tpu_custom_call.1} parent=23 // pred_check_branch
          %1472 = sbr.rel (%p1470) target = $region32
        $region31: #{tpu_custom_call.1} parent=23 // pred_region
          %s1474 = ssub.s32 256, 256
          %1475 = vsyncadd %s1466, %s1474
          %s1476 = smul.addr %s18, 128
          %s1477 = scalar_lea.hbm %s1, %s1476
          %s1478 = sshll.u32 %s1469, 4
          %s1479 = int_to_ptr.vmem [resolvable:$true] %s1478
          %1484 = dma.vmem_to_hbm [thread:$0]  %s1479, 256, %s1477, %s1466, 128, 256, 8
        $region32: #{tpu_custom_call.1} parent=23 // pred_fallthru
          _
      $region24: #{tpu_custom_call.1} parent=5 // pred_fallthru
        _
      %p1485 = scmp.le.s32.totalorder 2, %s13
      // Predicated region
      $region33: #{tpu_custom_call.1} parent=5 // pred_check
        %p1486 = pneg %p1485
      $region34: #{tpu_custom_call.1} parent=5 // pred_check_branch
        %1488 = sbr.rel (%p1486) target = $region36
      $region35: #{tpu_custom_call.1} parent=5 // pred_region
        %s1489 = ssub.s32 %s13, 2
        // Predicated region
        $region37: #{tpu_custom_call.1} parent=35 // pred_check
          %p1490 = pneg %p68
        $region38: #{tpu_custom_call.1} parent=35 // pred_check_branch
          %1492 = sbr.rel (%p1490) target = $region40
        $region39: #{tpu_custom_call.1} parent=35 // pred_region
          %s1493 = sand.u32 %s53, 1
          %s1494 = scalar_lea.sflag [#allocation4], %s1493
          %s1495 = sand.u32 %s53, 1
          %s1496 = smul.addr %s1495, 16
          %s1497 = scalar_lea.vmem [#allocation5], %s1496
          %1498 = dma.done %s1494, 256
        $region40: #{tpu_custom_call.1} parent=35 // pred_fallthru
          _
      $region36: #{tpu_custom_call.1} parent=5 // pred_fallthru
        _
    $region6: #{tpu_custom_call.1} parent=1 // loop_footer
      %s17 = sadd.s32 1, %s13
    $region7: #{tpu_custom_call.1} parent=1 // loop_footer_branch
      %12 = sbr.rel target = $region3
    $region8: #{tpu_custom_call.1} parent=1 // loop_exit
      _
    %1499 = vsyncpa [#allocation3], 1
    %s1500 = scalar_lea.sflag [#allocation3], 1
    %1501 = vsyncpa %s1500, 1
    %1502 = vsyncpa [#allocation4], 1
    %s1503 = scalar_lea.sflag [#allocation4], 1
    %1504 = vsyncpa %s1503, 1

</llo_original>
